<compile_context>
chip_gen: v7x
topology: tpu7x:2x2x1
jax: 0.10.0
libtpu: 0.0.40
codegen_flags: <defaults>
</compile_context>

<pallas_src>
import jax
import jax.numpy as jnp
import numpy as np
from jax.experimental import pallas as pl
from jax.experimental.pallas import tpu as pltpu


def teacher_f_kernel(feat_ref, imp_ref, w1_ref, b1_ref, w2_ref, b2_ref,
                     h1_ref, h2_ref):
    # NaN imputation: where(isnan(feature), imp_feat, feature)  (f32 on VPU)
    feat = feat_ref[...]
    x = jnp.where(jnp.isnan(feat), imp_ref[...], feat)

    # fm1: x @ W1 + b1  (stored pre-activation, matching the PyTorch module's
    # middle_representations[0]).
    h1 = jnp.dot(x, w1_ref[...], preferred_element_type=jnp.float32) + b1_ref[...]
    h1_ref[...] = h1

    # TODO(synk): F.dropout with training=True is stochastic; kernel implements
    # eval-mode (identity) dropout.
    h = jnp.maximum(h1, 0.0)  # relu

    # fm2: h @ W2 + b2
    h2_ref[...] = (jnp.dot(h, w2_ref[...], preferred_element_type=jnp.float32)
                   + b2_ref[...])


def _round_up(x, m):
    return ((x + m - 1) // m) * m


def teacher_f_forward(feature, imp_feat, w1, b1, w2, b2, *, tile_m=8192):
    num_nodes, in_size = feature.shape
    hidden_size = w1.shape[1]
    out_size = w2.shape[1]

    # ---- tile selection --------------------------------------------------
    # Cap so the double-buffered streaming working set stays well under
    # v7x's 64 MiB physical VMEM (no cost on v5e/v6e with 128 MiB).
    tile_m = min(int(tile_m), 16384)
    # Guarantee several grid steps when the problem allows it: restores
    # DMA/compute overlap and keeps both v7x TensorCores busy.
    MIN_STEPS = 4
    tile_m = min(tile_m, _round_up(pl.cdiv(num_nodes, MIN_STEPS), 8))
    tile_m = max(8, _round_up(tile_m, 8))

    # Ragged last block handled by Pallas; no input padding / extra HBM pass.
    grid = (pl.cdiv(num_nodes, tile_m),)

    # ---- explicit VMEM budget ---------------------------------------------
    io_bytes_per_row = 4 * (2 * in_size + hidden_size + out_size)
    param_bytes = 4 * (in_size * hidden_size + hidden_size
                       + hidden_size * out_size + out_size)
    vmem_need = 2 * tile_m * io_bytes_per_row + 2 * param_bytes   # double-buffered
    vmem_limit = int(min(max(2 * vmem_need, 32 << 20), 48 << 20))

    def node_spec(cols):
        return pl.BlockSpec((tile_m, cols), lambda i: (i, 0))

    def resident_spec(shape):
        # Same block every grid step -> weights/biases stay resident in VMEM.
        return pl.BlockSpec(shape, lambda i: (0, 0))

    h1, h2 = pl.pallas_call(
        teacher_f_kernel,
        out_shape=(
            jax.ShapeDtypeStruct((num_nodes, hidden_size), jnp.float32),
            jax.ShapeDtypeStruct((num_nodes, out_size), jnp.float32),
        ),
        grid_spec=pltpu.PrefetchScalarGridSpec(
            num_scalar_prefetch=0,
            grid=grid,
            in_specs=[
                node_spec(in_size),                      # feature tile
                node_spec(in_size),                      # imp_feat tile
                resident_spec((in_size, hidden_size)),   # W1
                resident_spec((1, hidden_size)),         # b1
                resident_spec((hidden_size, out_size)),  # W2
                resident_spec((1, out_size)),            # b2
            ],
            out_specs=(
                pl.BlockSpec((tile_m, hidden_size), lambda i: (i, 0)),
                pl.BlockSpec((tile_m, out_size), lambda i: (i, 0)),
            ),
        ),
        compiler_params=pltpu.CompilerParams(
            dimension_semantics=("parallel",),
            vmem_limit_bytes=vmem_limit),
    )(feature, imp_feat, w1, b1, w2, b2)

    # Match PyTorch return: (h, [h_mid1, h_mid2])
    return h2, [h1, h2]


def xavier_uniform(key, fan_in, fan_out, gain=1.0):
    # torch.nn.init.xavier_uniform_ on weight of shape (out, in):
    # bound = gain * sqrt(6 / (fan_in + fan_out))
    bound = gain * np.sqrt(6.0 / (fan_in + fan_out))
    return jax.random.uniform(key, (fan_in, fan_out), jnp.float32,
                              minval=-bound, maxval=bound)


def xavier_normal(key, rows, cols, gain=1.414):
    std = gain * np.sqrt(2.0 / (rows + cols))
    return std * jax.random.normal(key, (rows, cols), jnp.float32)


if __name__ == "__main__":
    # Small config; num_nodes intentionally not a tile multiple so the cdiv
    # grid + ragged last block path is exercised (tile_m -> 80, grid of 4).
    num_nodes, in_size, hidden_size, out_size = 300, 32, 64, 16
    dropout = 0.5  # unused at eval time

    key = jax.random.PRNGKey(0)
    k_imp, k_w1, k_w2, k_feat, k_mask = jax.random.split(key, 5)

    # Parameters (deterministic init mirroring the PyTorch module)
    imp_feat = xavier_normal(k_imp, num_nodes, in_size, gain=1.414)
    w1 = xavier_uniform(k_w1, in_size, hidden_size)   # fm1 weight (pre-transposed)
    b1 = jnp.zeros((1, hidden_size), jnp.float32)     # fm1 bias (fill 0.0)
    w2 = xavier_uniform(k_w2, hidden_size, out_size)  # fm2 weight (pre-transposed)
    b2 = jnp.zeros((1, out_size), jnp.float32)        # fm2 bias (fill 0.0)

    # Input feature with some NaN entries to exercise the imputation path
    feature = jax.random.normal(k_feat, (num_nodes, in_size), jnp.float32)
    nan_mask = jax.random.bernoulli(k_mask, 0.25, (num_nodes, in_size))
    feature = jnp.where(nan_mask, jnp.nan, feature)

    h, mids = teacher_f_forward(feature, imp_feat, w1, b1, w2, b2)
    jax.block_until_ready(h)
    jax.block_until_ready(mids)

    # Sanity check against a pure-JAX reference (highest-precision dots so the
    # reference itself does not introduce bf16 error on TPU).
    x_ref = jnp.where(jnp.isnan(feature), imp_feat, feature)
    h1_ref = jnp.dot(x_ref, w1, precision=jax.lax.Precision.HIGHEST) + b1
    h2_ref = (jnp.dot(jnp.maximum(h1_ref, 0.0), w2,
                      precision=jax.lax.Precision.HIGHEST) + b2)
    np.testing.assert_allclose(np.asarray(mids[0]), np.asarray(h1_ref),
                               rtol=1e-5, atol=1e-5)
    np.testing.assert_allclose(np.asarray(h), np.asarray(h2_ref),
                               rtol=1e-5, atol=1e-5)
    assert not np.any(np.isnan(np.asarray(h)))
    assert h.shape == (num_nodes, out_size)
    assert mids[0].shape == (num_nodes, hidden_size)

    print("KERNEL_OK")
</pallas_src>

<mosaic_0001>
module attributes {stable_mosaic.version = 11 : i64} {
  func.func @teacher_f_kernel(%arg0: i32, %arg1: memref<80x32xf32, #tpu.memory_space<vmem>>, %arg2: memref<80x32xf32, #tpu.memory_space<vmem>>, %arg3: memref<32x64xf32, #tpu.memory_space<vmem>>, %arg4: memref<1x64xf32, #tpu.memory_space<vmem>>, %arg5: memref<64x16xf32, #tpu.memory_space<vmem>>, %arg6: memref<1x16xf32, #tpu.memory_space<vmem>>, %arg7: memref<80x64xf32, #tpu.memory_space<vmem>>, %arg8: memref<80x16xf32, #tpu.memory_space<vmem>>) attributes {dimension_semantics = [#tpu.dimension_semantics<parallel>], iteration_bounds = array<i64: 4>, scalar_prefetch = 0 : i64, scratch_operands = 0 : i64, tpu.core_type = #tpu.core_type<tc>, window_params = [{transform_indices = @transform_0, window_bounds = array<i64: 80, 32>}, {transform_indices = @transform_1, window_bounds = array<i64: 80, 32>}, {pipeline_mode = #tpu.pipeline_mode<synchronous>, transform_indices = @transform_2, window_bounds = array<i64: 32, 64>}, {pipeline_mode = #tpu.pipeline_mode<synchronous>, transform_indices = @transform_3, window_bounds = array<i64: 1, 64>}, {pipeline_mode = #tpu.pipeline_mode<synchronous>, transform_indices = @transform_4, window_bounds = array<i64: 64, 16>}, {pipeline_mode = #tpu.pipeline_mode<synchronous>, transform_indices = @transform_5, window_bounds = array<i64: 1, 16>}, {transform_indices = @transform_6, window_bounds = array<i64: 80, 64>}, {transform_indices = @transform_7, window_bounds = array<i64: 80, 16>}]} {
    %c0 = arith.constant 0 : index
    %c0_0 = arith.constant 0 : index
    %0 = vector.load %arg1[%c0, %c0_0] : memref<80x32xf32, #tpu.memory_space<vmem>>, vector<80x32xf32>
    %1 = arith.cmpf one, %0, %0 : vector<80x32xf32>
    %c0_1 = arith.constant 0 : index
    %c0_2 = arith.constant 0 : index
    %2 = vector.load %arg2[%c0_1, %c0_2] : memref<80x32xf32, #tpu.memory_space<vmem>>, vector<80x32xf32>
    %3 = arith.select %1, %2, %0 : vector<80x32xi1>, vector<80x32xf32>
    %c0_3 = arith.constant 0 : index
    %c0_4 = arith.constant 0 : index
    %4 = vector.load %arg3[%c0_3, %c0_4] : memref<32x64xf32, #tpu.memory_space<vmem>>, vector<32x64xf32>
    %cst = arith.constant dense<0.000000e+00> : vector<80x64xf32>
    %5 = tpu.matmul %3, %4, %cst {dimension_numbers = #tpu.dot_dimension_numbers<[1], [0], [0], [1], [0, 0, 1, 1], [], []>} : vector<80x32xf32>, vector<32x64xf32>, vector<80x64xf32> -> vector<80x64xf32>
    %c0_5 = arith.constant 0 : index
    %c0_6 = arith.constant 0 : index
    %6 = vector.load %arg4[%c0_5, %c0_6] : memref<1x64xf32, #tpu.memory_space<vmem>>, vector<1x64xf32>
    %7 = vector.broadcast %6 : vector<1x64xf32> to vector<80x64xf32>
    %8 = arith.addf %5, %7 : vector<80x64xf32>
    %c0_7 = arith.constant 0 : index
    %c0_8 = arith.constant 0 : index
    %9 = vector.load %arg7[%c0_7, %c0_8] : memref<80x64xf32, #tpu.memory_space<vmem>>, vector<80x64xf32>
    tpu.vector_store %arg7[%c0_7, %c0_8], %8 {strides = array<i32>} : memref<80x64xf32, #tpu.memory_space<vmem>>, vector<80x64xf32>,
    %cst_9 = arith.constant 0.000000e+00 : f32
    %10 = vector.broadcast %cst_9 : f32 to vector<80x64xf32>
    %11 = arith.maximumf %8, %10 : vector<80x64xf32>
    %c0_10 = arith.constant 0 : index
    %c0_11 = arith.constant 0 : index
    %12 = vector.load %arg5[%c0_10, %c0_11] : memref<64x16xf32, #tpu.memory_space<vmem>>, vector<64x16xf32>
    %cst_12 = arith.constant dense<0.000000e+00> : vector<80x16xf32>
    %13 = tpu.matmul %11, %12, %cst_12 {dimension_numbers = #tpu.dot_dimension_numbers<[1], [0], [0], [1], [0, 0, 1, 1], [], []>} : vector<80x64xf32>, vector<64x16xf32>, vector<80x16xf32> -> vector<80x16xf32>
    %c0_13 = arith.constant 0 : index
    %c0_14 = arith.constant 0 : index
    %14 = vector.load %arg6[%c0_13, %c0_14] : memref<1x16xf32, #tpu.memory_space<vmem>>, vector<1x16xf32>
    %15 = vector.broadcast %14 : vector<1x16xf32> to vector<80x16xf32>
    %16 = arith.addf %13, %15 : vector<80x16xf32>
    %c0_15 = arith.constant 0 : index
    %c0_16 = arith.constant 0 : index
    %17 = vector.load %arg8[%c0_15, %c0_16] : memref<80x16xf32, #tpu.memory_space<vmem>>, vector<80x16xf32>
    tpu.vector_store %arg8[%c0_15, %c0_16], %16 {strides = array<i32>} : memref<80x16xf32, #tpu.memory_space<vmem>>, vector<80x16xf32>,
    return
  }
  func.func @transform_0(%arg0: i32) -> (i32, i32) {
    %c0_i32 = arith.constant 0 : i32
    %c0_i32_0 = arith.constant 0 : i32
    return %arg0, %c0_i32 : i32, i32
  }
  func.func @transform_1(%arg0: i32) -> (i32, i32) {
    %c0_i32 = arith.constant 0 : i32
    %c0_i32_0 = arith.constant 0 : i32
    return %arg0, %c0_i32 : i32, i32
  }
  func.func @transform_2(%arg0: i32) -> (i32, i32) {
    %c0_i32 = arith.constant 0 : i32
    %c0_i32_0 = arith.constant 0 : i32
    %c0_i32_1 = arith.constant 0 : i32
    return %c0_i32, %c0_i32_0 : i32, i32
  }
  func.func @transform_3(%arg0: i32) -> (i32, i32) {
    %c0_i32 = arith.constant 0 : i32
    %c0_i32_0 = arith.constant 0 : i32
    %c0_i32_1 = arith.constant 0 : i32
    return %c0_i32, %c0_i32_0 : i32, i32
  }
  func.func @transform_4(%arg0: i32) -> (i32, i32) {
    %c0_i32 = arith.constant 0 : i32
    %c0_i32_0 = arith.constant 0 : i32
    %c0_i32_1 = arith.constant 0 : i32
    return %c0_i32, %c0_i32_0 : i32, i32
  }
  func.func @transform_5(%arg0: i32) -> (i32, i32) {
    %c0_i32 = arith.constant 0 : i32
    %c0_i32_0 = arith.constant 0 : i32
    %c0_i32_1 = arith.constant 0 : i32
    return %c0_i32, %c0_i32_0 : i32, i32
  }
  func.func @transform_6(%arg0: i32) -> (i32, i32) {
    %c0_i32 = arith.constant 0 : i32
    %c0_i32_0 = arith.constant 0 : i32
    return %arg0, %c0_i32 : i32, i32
  }
  func.func @transform_7(%arg0: i32) -> (i32, i32) {
    %c0_i32 = arith.constant 0 : i32
    %c0_i32_0 = arith.constant 0 : i32
    return %arg0, %c0_i32 : i32, i32
  }
}

</mosaic_0001>

<llo_original>
// kernel: tpu_custom_call.1
$region0: #{tpu_custom_call.1}
  #allocation0 [shape = 'u32[]', space=smem, size = 0x4, offset = 0x4, fixed_abs, tag = 'smem constant byte address 0x4 - core index']
  #allocation1 [shape = 'u32[144,128]{1,0:T(1,128)}', space=vmem, size = 0x12000, scoped, tag = 'internal scratch']
  %s0 = inlined_call_operand.vmem [shape: f32[300,32], index: 0, kind: input, shape index: {}]
  %s1 = inlined_call_operand.vmem [shape: f32[300,32], index: 1, kind: input, shape index: {}]
  %s2 = inlined_call_operand.vmem [shape: f32[32,64], index: 2, kind: input, shape index: {}]
  %s3 = inlined_call_operand.vmem [shape: f32[1,64], index: 3, kind: input, shape index: {}]
  %s4 = inlined_call_operand.vmem [shape: f32[64,16], index: 4, kind: input, shape index: {}]
  %s5 = inlined_call_operand.vmem [shape: f32[1,16], index: 5, kind: input, shape index: {}]
  %s6 = inlined_call_operand.vmem [shape: f32[300,64], index: 6, kind: output, shape index: {0}]
  %s7 = inlined_call_operand.vmem [shape: f32[300,16], index: 7, kind: output, shape index: {1}]
  %8 = xla_tuple %s6, %s7
  %s9 = sld [smem:[#allocation0]]
  $region161: #{tpu_custom_call.1} parent=0
    _
  %s11 = ssub.s32 1, %s9
  %s12 = scalar_select 0, %s11, %s9
  $region1: #{tpu_custom_call.1} parent=0
    #allocation2 [shape = 'u8[81920]{0}', space=vmem, size = 0x14000, scoped, tag = 'output window, operand 0']
    #allocation3 [shape = 'u8[81920]{0}', space=vmem, size = 0x14000, scoped, tag = 'output window, operand 1']
    loop: start=0, step=1, limit=6
    $region2: #{tpu_custom_call.1} parent=1 // loop_pre_header
      _
    $region3: #{tpu_custom_call.1} parent=1 // loop_header
      %s14 = sphi 0, %s18
      %p15 = scmp.ge.s32.totalorder %s14, 6
      %s24 = sphi 0, %s26
      %s27 = sphi 0, %s24
      %s28 = sphi 0, %s27
      %s44 = sphi 0, %s28
      %s50 = sphi 0, %s52
      %s53 = sphi 0, %s50
      %s54 = sphi 0, %s53
      %s70 = sphi 0, %s54
      %s74 = sphi 0, %s74
      %s76 = sphi 0, %s74
      %s77 = sphi 0, %s76
      %s91 = sphi 0, %s77
      %s95 = sphi 0, %s95
      %s97 = sphi 0, %s95
      %s98 = sphi 0, %s97
      %s112 = sphi 0, %s98
      %s116 = sphi 0, %s116
      %s118 = sphi 0, %s116
      %s119 = sphi 0, %s118
      %s133 = sphi 0, %s119
      %s137 = sphi 0, %s137
      %s139 = sphi 0, %s137
      %s140 = sphi 0, %s139
      %s154 = sphi 0, %s140
      %s160 = sphi 0, %s162
      %s163 = sphi 0, %s160
      %s164 = sphi 0, %s163
      %s180 = sphi 0, %s164
      %s186 = sphi 0, %s188
      %s189 = sphi 0, %s186
      %s190 = sphi 0, %s189
      %s206 = sphi 0, %s190
    $region4: #{tpu_custom_call.1} parent=1 // loop_header_branch
      %17 = sbr.rel (%p15) target = $region8
    $region5: #{tpu_custom_call.1} parent=1 // loop_body
      %s19 = ssub.s32 %s14, 1
      %s20 = ssub.s32 %s14, 2
      %s21 = sadd.s32 %s14, 1
      %s22 = ssub.s32 %s14, %s21
      %p23 = scmp.eq.s32.totalorder %s22, 0
      %s25 = sadd.s32 %s24, 1
      %s26 = scalar_select %p23, %s24, %s25
      %p29 = pneg %p23
      %p30 = scmp.eq.s32.totalorder %s14, 3
      %p31 = por %p29, %p30
      %p32 = scmp.ne.s32.totalorder %s24, %s27
      %p33 = scmp.eq.s32.totalorder %s14, 0
      %p34 = por %p32, %p33
      %p35 = scmp.ne.s32.totalorder %s24, %s27
      %p36 = scmp.eq.s32.totalorder %s19, 3
      %p37 = por %p35, %p36
      %p38 = scmp.ne.s32.totalorder %s27, %s28
      %p39 = scmp.eq.s32.totalorder %s19, 0
      %p40 = por %p38, %p39
      %p41 = scmp.ne.s32.totalorder %s27, %s28
      %p42 = scmp.eq.s32.totalorder %s20, 3
      %p43 = por %p41, %p42
      %p45 = scmp.ne.s32.totalorder %s28, %s44
      %p46 = scmp.eq.s32.totalorder %s20, 0
      %p47 = por %p45, %p46
      %s48 = ssub.s32 %s14, %s21
      %p49 = scmp.eq.s32.totalorder %s48, 0
      %s51 = sadd.s32 %s50, 1
      %s52 = scalar_select %p49, %s50, %s51
      %p55 = pneg %p49
      %p56 = scmp.eq.s32.totalorder %s14, 3
      %p57 = por %p55, %p56
      %p58 = scmp.ne.s32.totalorder %s50, %s53
      %p59 = scmp.eq.s32.totalorder %s14, 0
      %p60 = por %p58, %p59
      %p61 = scmp.ne.s32.totalorder %s50, %s53
      %p62 = scmp.eq.s32.totalorder %s19, 3
      %p63 = por %p61, %p62
      %p64 = scmp.ne.s32.totalorder %s53, %s54
      %p65 = scmp.eq.s32.totalorder %s19, 0
      %p66 = por %p64, %p65
      %p67 = scmp.ne.s32.totalorder %s53, %s54
      %p68 = scmp.eq.s32.totalorder %s20, 3
      %p69 = por %p67, %p68
      %p71 = scmp.ne.s32.totalorder %s54, %s70
      %p72 = scmp.eq.s32.totalorder %s20, 0
      %p73 = por %p71, %p72
      %s75 = sadd.s32 %s74, 1
      %p78 = scmp.eq.s32.totalorder %s14, 3
      %p79 = scmp.ne.s32.totalorder %s74, %s76
      %p80 = scmp.eq.s32.totalorder %s14, 0
      %p81 = por %p79, %p80
      %p82 = scmp.ne.s32.totalorder %s74, %s76
      %p83 = scmp.eq.s32.totalorder %s19, 3
      %p84 = por %p82, %p83
      %p85 = scmp.ne.s32.totalorder %s76, %s77
      %p86 = scmp.eq.s32.totalorder %s19, 0
      %p87 = por %p85, %p86
      %p88 = scmp.ne.s32.totalorder %s76, %s77
      %p89 = scmp.eq.s32.totalorder %s20, 3
      %p90 = por %p88, %p89
      %p92 = scmp.ne.s32.totalorder %s77, %s91
      %p93 = scmp.eq.s32.totalorder %s20, 0
      %p94 = por %p92, %p93
      %s96 = sadd.s32 %s95, 1
      %p99 = scmp.eq.s32.totalorder %s14, 3
      %p100 = scmp.ne.s32.totalorder %s95, %s97
      %p101 = scmp.eq.s32.totalorder %s14, 0
      %p102 = por %p100, %p101
      %p103 = scmp.ne.s32.totalorder %s95, %s97
      %p104 = scmp.eq.s32.totalorder %s19, 3
      %p105 = por %p103, %p104
      %p106 = scmp.ne.s32.totalorder %s97, %s98
      %p107 = scmp.eq.s32.totalorder %s19, 0
      %p108 = por %p106, %p107
      %p109 = scmp.ne.s32.totalorder %s97, %s98
      %p110 = scmp.eq.s32.totalorder %s20, 3
      %p111 = por %p109, %p110
      %p113 = scmp.ne.s32.totalorder %s98, %s112
      %p114 = scmp.eq.s32.totalorder %s20, 0
      %p115 = por %p113, %p114
      %s117 = sadd.s32 %s116, 1
      %p120 = scmp.eq.s32.totalorder %s14, 3
      %p121 = scmp.ne.s32.totalorder %s116, %s118
      %p122 = scmp.eq.s32.totalorder %s14, 0
      %p123 = por %p121, %p122
      %p124 = scmp.ne.s32.totalorder %s116, %s118
      %p125 = scmp.eq.s32.totalorder %s19, 3
      %p126 = por %p124, %p125
      %p127 = scmp.ne.s32.totalorder %s118, %s119
      %p128 = scmp.eq.s32.totalorder %s19, 0
      %p129 = por %p127, %p128
      %p130 = scmp.ne.s32.totalorder %s118, %s119
      %p131 = scmp.eq.s32.totalorder %s20, 3
      %p132 = por %p130, %p131
      %p134 = scmp.ne.s32.totalorder %s119, %s133
      %p135 = scmp.eq.s32.totalorder %s20, 0
      %p136 = por %p134, %p135
      %s138 = sadd.s32 %s137, 1
      %p141 = scmp.eq.s32.totalorder %s14, 3
      %p142 = scmp.ne.s32.totalorder %s137, %s139
      %p143 = scmp.eq.s32.totalorder %s14, 0
      %p144 = por %p142, %p143
      %p145 = scmp.ne.s32.totalorder %s137, %s139
      %p146 = scmp.eq.s32.totalorder %s19, 3
      %p147 = por %p145, %p146
      %p148 = scmp.ne.s32.totalorder %s139, %s140
      %p149 = scmp.eq.s32.totalorder %s19, 0
      %p150 = por %p148, %p149
      %p151 = scmp.ne.s32.totalorder %s139, %s140
      %p152 = scmp.eq.s32.totalorder %s20, 3
      %p153 = por %p151, %p152
      %p155 = scmp.ne.s32.totalorder %s140, %s154
      %p156 = scmp.eq.s32.totalorder %s20, 0
      %p157 = por %p155, %p156
      %s158 = ssub.s32 %s14, %s21
      %p159 = scmp.eq.s32.totalorder %s158, 0
      %s161 = sadd.s32 %s160, 1
      %s162 = scalar_select %p159, %s160, %s161
      %p165 = pneg %p159
      %p166 = scmp.eq.s32.totalorder %s14, 3
      %p167 = por %p165, %p166
      %p168 = scmp.ne.s32.totalorder %s160, %s163
      %p169 = scmp.eq.s32.totalorder %s14, 0
      %p170 = por %p168, %p169
      %p171 = scmp.ne.s32.totalorder %s160, %s163
      %p172 = scmp.eq.s32.totalorder %s19, 3
      %p173 = por %p171, %p172
      %p174 = scmp.ne.s32.totalorder %s163, %s164
      %p175 = scmp.eq.s32.totalorder %s19, 0
      %p176 = por %p174, %p175
      %p177 = scmp.ne.s32.totalorder %s163, %s164
      %p178 = scmp.eq.s32.totalorder %s20, 3
      %p179 = por %p177, %p178
      %p181 = scmp.ne.s32.totalorder %s164, %s180
      %p182 = scmp.eq.s32.totalorder %s20, 0
      %p183 = por %p181, %p182
      %s184 = ssub.s32 %s14, %s21
      %p185 = scmp.eq.s32.totalorder %s184, 0
      %s187 = sadd.s32 %s186, 1
      %s188 = scalar_select %p185, %s186, %s187
      %p191 = pneg %p185
      %p192 = scmp.eq.s32.totalorder %s14, 3
      %p193 = por %p191, %p192
      %p194 = scmp.ne.s32.totalorder %s186, %s189
      %p195 = scmp.eq.s32.totalorder %s14, 0
      %p196 = por %p194, %p195
      %p197 = scmp.ne.s32.totalorder %s186, %s189
      %p198 = scmp.eq.s32.totalorder %s19, 3
      %p199 = por %p197, %p198
      %p200 = scmp.ne.s32.totalorder %s189, %s190
      %p201 = scmp.eq.s32.totalorder %s19, 0
      %p202 = por %p200, %p201
      %p203 = scmp.ne.s32.totalorder %s189, %s190
      %p204 = scmp.eq.s32.totalorder %s20, 3
      %p205 = por %p203, %p204
      %p207 = scmp.ne.s32.totalorder %s190, %s206
      %p208 = scmp.eq.s32.totalorder %s20, 0
      %p209 = por %p207, %p208
      %p210 = scmp.le.s32.totalorder 1, %s14
      %p211 = scmp.lt.s32.totalorder %s14, 5
      %p212 = pnand %p210, %p211
      %p213 = pneg %p212
      // Predicated region
      $region9: #{tpu_custom_call.1} parent=5 // pred_check
        _
      $region10: #{tpu_custom_call.1} parent=5 // pred_check_branch
        %215 = sbr.rel (%p212) target = $region12
      $region11: #{tpu_custom_call.1} parent=5 // pred_region
        %s216 = ssub.s32 %s14, 1
        // Predicated region
        $region13: #{tpu_custom_call.1} parent=11 // pred_check
          %p217 = pneg %p87
        $region14: #{tpu_custom_call.1} parent=11 // pred_check_branch
          %219 = sbr.rel (%p217) target = $region16
        $region15: #{tpu_custom_call.1} parent=11 // pred_region
          _
        $region16: #{tpu_custom_call.1} parent=11 // pred_fallthru
          _
        // Predicated region
        $region17: #{tpu_custom_call.1} parent=11 // pred_check
          %p220 = pneg %p108
        $region18: #{tpu_custom_call.1} parent=11 // pred_check_branch
          %222 = sbr.rel (%p220) target = $region20
        $region19: #{tpu_custom_call.1} parent=11 // pred_region
          _
        $region20: #{tpu_custom_call.1} parent=11 // pred_fallthru
          _
        // Predicated region
        $region21: #{tpu_custom_call.1} parent=11 // pred_check
          %p223 = pneg %p129
        $region22: #{tpu_custom_call.1} parent=11 // pred_check_branch
          %225 = sbr.rel (%p223) target = $region24
        $region23: #{tpu_custom_call.1} parent=11 // pred_region
          _
        $region24: #{tpu_custom_call.1} parent=11 // pred_fallthru
          _
        // Predicated region
        $region25: #{tpu_custom_call.1} parent=11 // pred_check
          %p226 = pneg %p150
        $region26: #{tpu_custom_call.1} parent=11 // pred_check_branch
          %228 = sbr.rel (%p226) target = $region28
        $region27: #{tpu_custom_call.1} parent=11 // pred_region
          _
        $region28: #{tpu_custom_call.1} parent=11 // pred_fallthru
          _
      $region12: #{tpu_custom_call.1} parent=5 // pred_fallthru
        _
      %p229 = scmp.lt.s32.totalorder %s14, 4
      // Predicated region
      $region29: #{tpu_custom_call.1} parent=5 // pred_check
        %p230 = pneg %p229
      $region30: #{tpu_custom_call.1} parent=5 // pred_check_branch
        %232 = sbr.rel (%p230) target = $region32
      $region31: #{tpu_custom_call.1} parent=5 // pred_region
        // Predicated region
        $region33: #{tpu_custom_call.1} parent=31 // pred_check
          %p233 = pneg %p34
        $region34: #{tpu_custom_call.1} parent=31 // pred_check_branch
          %235 = sbr.rel (%p233) target = $region36
        $region35: #{tpu_custom_call.1} parent=31 // pred_region
          %s236 = smul.u32 10, %s14
          %s237 = ssub.s32 38, %s236
          %p238 = scmp.lt.s32.totalorder %s237, 10
          %s239 = scalar_select %p238, %s237, 10
          %s240 = smul.u32 128, %s239
          %p241 = scmp.lt.s32.totalorder %s236, 37
          %s242 = scalar_select %p241, %s236, 37
          %s243 = smul.addr %s242, 8
          %s244 = scalar_lea.vmem %s0, %s243
          %s245 = smul.u32 10, %s14
          %s246 = ssub.s32 38, %s245
          %p247 = scmp.lt.s32.totalorder %s246, 10
          %s248 = scalar_select %p247, %s246, 10
          %s249 = smul.u32 128, %s248
        $region36: #{tpu_custom_call.1} parent=31 // pred_fallthru
          _
        // Predicated region
        $region37: #{tpu_custom_call.1} parent=31 // pred_check
          %p250 = pneg %p60
        $region38: #{tpu_custom_call.1} parent=31 // pred_check_branch
          %252 = sbr.rel (%p250) target = $region40
        $region39: #{tpu_custom_call.1} parent=31 // pred_region
          %s253 = smul.u32 10, %s14
          %s254 = ssub.s32 38, %s253
          %p255 = scmp.lt.s32.totalorder %s254, 10
          %s256 = scalar_select %p255, %s254, 10
          %s257 = smul.u32 128, %s256
          %p258 = scmp.lt.s32.totalorder %s253, 37
          %s259 = scalar_select %p258, %s253, 37
          %s260 = smul.addr %s259, 8
          %s261 = scalar_lea.vmem %s1, %s260
          %s262 = smul.u32 10, %s14
          %s263 = ssub.s32 38, %s262
          %p264 = scmp.lt.s32.totalorder %s263, 10
          %s265 = scalar_select %p264, %s263, 10
          %s266 = smul.u32 128, %s265
        $region40: #{tpu_custom_call.1} parent=31 // pred_fallthru
          _
      $region32: #{tpu_custom_call.1} parent=5 // pred_fallthru
        _
      %p267 = scmp.le.s32.totalorder 1, %s14
      %p268 = scmp.lt.s32.totalorder %s14, 5
      %p269 = pnand %p267, %p268
      %p270 = pneg %p269
      // Predicated region
      $region41: #{tpu_custom_call.1} parent=5 // pred_check
        _
      $region42: #{tpu_custom_call.1} parent=5 // pred_check_branch
        %272 = sbr.rel (%p269) target = $region44
      $region43: #{tpu_custom_call.1} parent=5 // pred_region
        %s273 = ssub.s32 %s14, 1
        %s274 = smul.u32 10, %s19
        %s275 = ssub.s32 38, %s274
        %p276 = scmp.lt.s32.totalorder %s275, 10
        %s277 = scalar_select %p276, %s275, 10
        %s278 = smul.u32 128, %s277
        %p279 = scmp.lt.s32.totalorder %s274, 37
        %s280 = scalar_select %p279, %s274, 37
        %s281 = smul.addr %s280, 8
        %s282 = scalar_lea.vmem %s0, %s281
        %p283 = pneg %p40
        %p284 = pneg %p37
        %s285 = smul.u32 10, %s19
        %s286 = ssub.s32 38, %s285
        %p287 = scmp.lt.s32.totalorder %s286, 10
        %s288 = scalar_select %p287, %s286, 10
        %s289 = smul.u32 128, %s288
        %p290 = scmp.lt.s32.totalorder %s285, 37
        %s291 = scalar_select %p290, %s285, 37
        %s292 = smul.addr %s291, 8
        %s293 = scalar_lea.vmem %s1, %s292
        %p294 = pneg %p66
        %p295 = pneg %p63
        %p296 = pneg %p87
        %p297 = pneg %p84
        %p298 = pneg %p108
        %p299 = pneg %p105
        %p300 = pneg %p129
        %p301 = pneg %p126
        %p302 = pneg %p150
        %p303 = pneg %p147
        %p304 = pneg %p176
        %p305 = pneg %p173
        %s306 = sand.u32 %s163, 1
        %s307 = sand.u32 %s163, 1
        %s308 = smul.addr %s307, 80
        %s309 = scalar_lea.vmem [#allocation2], %s308
        %p310 = pneg %p202
        %p311 = pneg %p199
        %s312 = sand.u32 %s189, 1
        %s313 = sand.u32 %s189, 1
        %s314 = smul.addr %s313, 80
        %s315 = scalar_lea.vmem [#allocation3], %s314
        %s316 = smul.u32 10, %s19
        %s317 = ssub.s32 38, %s316
        %p318 = scmp.lt.s32.totalorder %s317, 10
        %s319 = scalar_select %p318, %s317, 10
        %s320 = smul.u32 128, %s319
        %p321 = scmp.lt.s32.totalorder %s316, 37
        %s322 = scalar_select %p321, %s316, 37
        %s323 = smul.addr %s322, 8
        %s324 = scalar_lea.vmem %s0, %s323
        %s325 = smul.u32 10, %s19
        %s326 = ssub.s32 38, %s325
        %p327 = scmp.lt.s32.totalorder %s326, 10
        %s328 = scalar_select %p327, %s326, 10
        %s329 = smul.u32 128, %s328
        %s330 = smul.u32 10, %s19
        %s331 = ssub.s32 38, %s330
        %p332 = scmp.lt.s32.totalorder %s331, 10
        %s333 = scalar_select %p332, %s331, 10
        %s334 = smul.u32 128, %s333
        %p335 = scmp.lt.s32.totalorder %s330, 37
        %s336 = scalar_select %p335, %s330, 37
        %s337 = smul.addr %s336, 8
        %s338 = scalar_lea.vmem %s1, %s337
        %s339 = smul.u32 10, %s19
        %s340 = ssub.s32 38, %s339
        %p341 = scmp.lt.s32.totalorder %s340, 10
        %s342 = scalar_select %p341, %s340, 10
        %s343 = smul.u32 128, %s342
        %s344 = smul.u32 10, %s19
        %s345 = ssub.s32 38, %s344
        %p346 = scmp.lt.s32.totalorder %s345, 10
        %s347 = scalar_select %p346, %s345, 10
        %s348 = smul.u32 128, %s347
        %s349 = smul.u32 10, %s19
        %s350 = ssub.s32 38, %s349
        %p351 = scmp.lt.s32.totalorder %s350, 10
        %s352 = scalar_select %p351, %s350, 10
        %s353 = smul.u32 128, %s352
        %v354 = vld [vmem:[%s324] sm:$0xff]
        %v355 = vld [vmem:[%s324 + $0x8] sm:$0xff]
        %v356 = vld [vmem:[%s324 + $0x10] sm:$0xff]
        %v357 = vld [vmem:[%s324 + $0x18] sm:$0xff]
        %v358 = vld [vmem:[%s324 + $0x20] sm:$0xff]
        %v359 = vld [vmem:[%s324 + $0x28] sm:$0xff]
        %v360 = vld [vmem:[%s324 + $0x30] sm:$0xff]
        %v361 = vld [vmem:[%s324 + $0x38] sm:$0xff]
        %v362 = vld [vmem:[%s324 + $0x40] sm:$0xff]
        %v363 = vld [vmem:[%s324 + $0x48] sm:$0xff]
        %vm364 = vcmp.ne.f32.partialorder %v354, %v354
        %vm365 = vcmp.ne.f32.partialorder %v355, %v355
        %vm366 = vcmp.ne.f32.partialorder %v356, %v356
        %vm367 = vcmp.ne.f32.partialorder %v357, %v357
        %vm368 = vcmp.ne.f32.partialorder %v358, %v358
        %vm369 = vcmp.ne.f32.partialorder %v359, %v359
        %vm370 = vcmp.ne.f32.partialorder %v360, %v360
        %vm371 = vcmp.ne.f32.partialorder %v361, %v361
        %vm372 = vcmp.ne.f32.partialorder %v362, %v362
        %vm373 = vcmp.ne.f32.partialorder %v363, %v363
        %v374 = vld [vmem:[%s338] sm:$0xff]
        %v375 = vld [vmem:[%s338 + $0x8] sm:$0xff]
        %v376 = vld [vmem:[%s338 + $0x10] sm:$0xff]
        %v377 = vld [vmem:[%s338 + $0x18] sm:$0xff]
        %v378 = vld [vmem:[%s338 + $0x20] sm:$0xff]
        %v379 = vld [vmem:[%s338 + $0x28] sm:$0xff]
        %v380 = vld [vmem:[%s338 + $0x30] sm:$0xff]
        %v381 = vld [vmem:[%s338 + $0x38] sm:$0xff]
        %v382 = vld [vmem:[%s338 + $0x40] sm:$0xff]
        %v383 = vld [vmem:[%s338 + $0x48] sm:$0xff]
        %v384 = vsel %vm364, %v374, %v354
        %v385 = vsel %vm365, %v375, %v355
        %v386 = vsel %vm366, %v376, %v356
        %v387 = vsel %vm367, %v377, %v357
        %v388 = vsel %vm368, %v378, %v358
        %v389 = vsel %vm369, %v379, %v359
        %v390 = vsel %vm370, %v380, %v360
        %v391 = vsel %vm371, %v381, %v361
        %v392 = vsel %vm372, %v382, %v362
        %v393 = vsel %vm373, %v383, %v363
        %v394 = vld [vmem:[%s2] sm:$0xff]
        %v395 = vld [vmem:[%s2 + $0x8] sm:$0xff]
        %v396 = vld [vmem:[%s2 + $0x10] sm:$0xff]
        %v397 = vld [vmem:[%s2 + $0x18] sm:$0xff]
        %v398 = vld [vmem:[%s3] sm:$0x1]
        %v400 = vlaneseq
        %v401 = vshrl.u32 %v400, 7
        %v402 = vsub.s32 0, %v401
        %v403 = vrot.slane %v398, %v402
        %vm405 = vcmask 261120
        %v407 = vsel %vm405, %v384, 0
        %v410 = vsel %vm405, %v385, 0
        %v413 = vsel %vm405, %v386, 0
        %v416 = vsel %vm405, %v387, 0
        %v419 = vsel %vm405, %v388, 0
        %v422 = vsel %vm405, %v389, 0
        %v425 = vsel %vm405, %v390, 0
        %v428 = vsel %vm405, %v391, 0
        %v431 = vsel %vm405, %v392, 0
        %v434 = vsel %vm405, %v393, 0
        %436 = vmatprep.subr.mxu0 0.0
        %437 = vmatpush1.msra.mxu0 %v394
        %438 = vmatprep.subr.mxu0 0.0
        %439 = vmatpush1.msra.mxu0 %v395
        %440 = vmatprep.subr.mxu0 0.0
        %441 = vmatpush1.msra.mxu0 %v396
        %442 = vmatprep.subr.mxu0 0.0
        %443 = vmatpush1.msra.mxu0 %v397
        %444 = vmatprep.subr.mxu0 0.0
        %445 = vmatpush1.msra.mxu0 0.0
        %446 = vmatprep.subr.mxu0 0.0
        %447 = vmatpush1.msra.mxu0 0.0
        %448 = vmatprep.subr.mxu0 0.0
        %449 = vmatpush1.msra.mxu0 0.0
        %450 = vmatprep.subr.mxu0 0.0
        %451 = vmatpush1.msra.mxu0 0.0
        %452 = vmatprep.subr.mxu0 0.0
        %453 = vmatpush1.msra.mxu0 0.0
        %454 = vmatprep.subr.mxu0 0.0
        %455 = vmatpush1.msra.mxu0 0.0
        %456 = vmatprep.subr.mxu0 0.0
        %457 = vmatpush1.msra.mxu0 0.0
        %458 = vmatprep.subr.mxu0 0.0
        %459 = vmatpush1.msra.mxu0 0.0
        %460 = vmatprep.subr.mxu0 0.0
        %461 = vmatpush1.msra.mxu0 0.0
        %462 = vmatprep.subr.mxu0 0.0
        %463 = vmatpush1.msra.mxu0 0.0
        %464 = vmatprep.subr.mxu0 0.0
        %465 = vmatpush1.msra.mxu0 0.0
        %466 = vmatprep.subr.mxu0 0.0
        %467 = vmatpush1.msra.mxu0 0.0
        %468 = vmatprep.subr.mxu0 0.0
        %469 = vmatpush1.msra.mxu0 0.0
        %470 = vmatprep.subr.mxu0 0.0
        %471 = vmatpush1.msra.mxu0 0.0
        %472 = vmatprep.subr.mxu0 0.0
        %473 = vmatpush1.msra.mxu0 0.0
        %474 = vmatprep.subr.mxu0 0.0
        %475 = vmatpush1.msra.mxu0 0.0
        %476 = vmatprep.subr.mxu0 0.0
        %477 = vmatpush1.msra.mxu0 0.0
        %478 = vmatprep.subr.mxu0 0.0
        %479 = vmatpush1.msra.mxu0 0.0
        %480 = vmatprep.subr.mxu0 0.0
        %481 = vmatpush1.msra.mxu0 0.0
        %482 = vmatprep.subr.mxu0 0.0
        %483 = vmatpush1.msra.mxu0 0.0
        %484 = vmatprep.subr.mxu0 0.0
        %485 = vmatpush1.msra.mxu0 0.0
        %486 = vmatprep.subr.mxu0 0.0
        %487 = vmatpush1.msra.mxu0 0.0
        %488 = vmatprep.subr.mxu0 0.0
        %489 = vmatpush1.msra.mxu0 0.0
        %490 = vmatprep.subr.mxu0 0.0
        %491 = vmatpush1.msra.mxu0 0.0
        %492 = vmatprep.subr.mxu0 0.0
        %493 = vmatpush1.msra.mxu0 0.0
        %494 = vmatprep.subr.mxu0 0.0
        %495 = vmatpush1.msra.mxu0 0.0
        %496 = vmatprep.subr.mxu0 0.0
        %497 = vmatpush1.msra.mxu0 0.0
        %498 = vmatprep.subr.mxu0 0.0
        %499 = vmatpush1.msra.mxu0 0.0
        %500 = vmatprep.mubr.f32.mxu0 0.0
        %501 = vmatmul.mubr.f32.gmra.mrb[0].mxu0 %v407
        %v502 = vpop.f32.mrb[0].mxu0
        %v503 = vadd.f32 %v403, %v502
        %v504 = vpop.f32.mrb[0].mxu0
        %505 = vmatprep.mubr.f32.mxu0 0.0
        %506 = vmatmul.mubr.f32.gmra.mrb[0].mxu0 %v410
        %v507 = vpop.f32.mrb[0].mxu0
        %v508 = vadd.f32 %v403, %v507
        %v509 = vpop.f32.mrb[0].mxu0
        %510 = vmatprep.mubr.f32.mxu0 0.0
        %511 = vmatmul.mubr.f32.gmra.mrb[0].mxu0 %v413
        %v512 = vpop.f32.mrb[0].mxu0
        %v513 = vadd.f32 %v403, %v512
        %v514 = vpop.f32.mrb[0].mxu0
        %515 = vmatprep.mubr.f32.mxu0 0.0
        %516 = vmatmul.mubr.f32.gmra.mrb[0].mxu0 %v416
        %v517 = vpop.f32.mrb[0].mxu0
        %v518 = vadd.f32 %v403, %v517
        %v519 = vpop.f32.mrb[0].mxu0
        %520 = vmatprep.mubr.f32.mxu0 0.0
        %521 = vmatmul.mubr.f32.gmra.mrb[0].mxu0 %v419
        %v522 = vpop.f32.mrb[0].mxu0
        %v523 = vadd.f32 %v403, %v522
        %v524 = vpop.f32.mrb[0].mxu0
        %525 = vmatprep.mubr.f32.mxu0 0.0
        %526 = vmatmul.mubr.f32.gmra.mrb[0].mxu0 %v422
        %v527 = vpop.f32.mrb[0].mxu0
        %v528 = vadd.f32 %v403, %v527
        %v529 = vpop.f32.mrb[0].mxu0
        %530 = vmatprep.mubr.f32.mxu0 0.0
        %531 = vmatmul.mubr.f32.gmra.mrb[0].mxu0 %v425
        %v532 = vpop.f32.mrb[0].mxu0
        %v533 = vadd.f32 %v403, %v532
        %v534 = vpop.f32.mrb[0].mxu0
        %535 = vmatprep.mubr.f32.mxu0 0.0
        %536 = vmatmul.mubr.f32.gmra.mrb[0].mxu0 %v428
        %v537 = vpop.f32.mrb[0].mxu0
        %v538 = vadd.f32 %v403, %v537
        %v539 = vpop.f32.mrb[0].mxu0
        %540 = vmatprep.mubr.f32.mxu0 0.0
        %541 = vmatmul.mubr.f32.gmra.mrb[0].mxu0 %v431
        %v542 = vpop.f32.mrb[0].mxu0
        %v543 = vadd.f32 %v403, %v542
        %v544 = vpop.f32.mrb[0].mxu0
        %545 = vmatprep.mubr.f32.mxu0 0.0
        %546 = vmatmul.mubr.f32.gmra.mrb[0].mxu0 %v434
        %v547 = vpop.f32.mrb[0].mxu0
        %v548 = vadd.f32 %v403, %v547
        %v549 = vpop.f32.mrb[0].mxu0
        %550 = vdwg.mxu0
        %vm551 = vcmask 523264
        %552 = vst.msk [vmem:[%s309] sm:$0xff] %vm551, %v503
        %553 = vst.msk [vmem:[%s309 + $0x8] sm:$0xff] %vm551, %v508
        %554 = vst.msk [vmem:[%s309 + $0x10] sm:$0xff] %vm551, %v513
        %555 = vst.msk [vmem:[%s309 + $0x18] sm:$0xff] %vm551, %v518
        %556 = vst.msk [vmem:[%s309 + $0x20] sm:$0xff] %vm551, %v523
        %557 = vst.msk [vmem:[%s309 + $0x28] sm:$0xff] %vm551, %v528
        %558 = vst.msk [vmem:[%s309 + $0x30] sm:$0xff] %vm551, %v533
        %559 = vst.msk [vmem:[%s309 + $0x38] sm:$0xff] %vm551, %v538
        %560 = vst.msk [vmem:[%s309 + $0x40] sm:$0xff] %vm551, %v543
        %561 = vst.msk [vmem:[%s309 + $0x48] sm:$0xff] %vm551, %v548
        %v562 = vmax.f32 %v503, 0.0
        %v563 = vmax.f32 %v508, 0.0
        %v564 = vmax.f32 %v513, 0.0
        %v565 = vmax.f32 %v518, 0.0
        %v566 = vmax.f32 %v523, 0.0
        %v567 = vmax.f32 %v528, 0.0
        %v568 = vmax.f32 %v533, 0.0
        %v569 = vmax.f32 %v538, 0.0
        %v570 = vmax.f32 %v543, 0.0
        %v571 = vmax.f32 %v548, 0.0
        %v572 = vld [vmem:[%s4] sm:$0xff]
        %v573 = vld [vmem:[%s4 + $0x8] sm:$0xff]
        %v574 = vld [vmem:[%s4 + $0x10] sm:$0xff]
        %v575 = vld [vmem:[%s4 + $0x18] sm:$0xff]
        %v576 = vld [vmem:[%s4 + $0x20] sm:$0xff]
        %v577 = vld [vmem:[%s4 + $0x28] sm:$0xff]
        %v578 = vld [vmem:[%s4 + $0x30] sm:$0xff]
        %v579 = vld [vmem:[%s4 + $0x38] sm:$0xff]
        %v580 = vld [vmem:[%s5] sm:$0x1]
        %v582 = vlaneseq
        %v583 = vshrl.u32 %v582, 7
        %v584 = vsub.s32 0, %v583
        %v585 = vrot.slane %v580, %v584
        %v588 = vsel %vm551, %v562, 0
        %v591 = vsel %vm551, %v563, 0
        %v594 = vsel %vm551, %v564, 0
        %v597 = vsel %vm551, %v565, 0
        %v600 = vsel %vm551, %v566, 0
        %v603 = vsel %vm551, %v567, 0
        %v606 = vsel %vm551, %v568, 0
        %v609 = vsel %vm551, %v569, 0
        %v612 = vsel %vm551, %v570, 0
        %v615 = vsel %vm551, %v571, 0
        %617 = vmatprep.subr.mxu0 0.0
        %618 = vmatpush1.msra.mxu0 %v572
        %619 = vmatprep.subr.mxu0 0.0
        %620 = vmatpush1.msra.mxu0 %v573
        %621 = vmatprep.subr.mxu0 0.0
        %622 = vmatpush1.msra.mxu0 %v574
        %623 = vmatprep.subr.mxu0 0.0
        %624 = vmatpush1.msra.mxu0 %v575
        %625 = vmatprep.subr.mxu0 0.0
        %626 = vmatpush1.msra.mxu0 %v576
        %627 = vmatprep.subr.mxu0 0.0
        %628 = vmatpush1.msra.mxu0 %v577
        %629 = vmatprep.subr.mxu0 0.0
        %630 = vmatpush1.msra.mxu0 %v578
        %631 = vmatprep.subr.mxu0 0.0
        %632 = vmatpush1.msra.mxu0 %v579
        %633 = vmatprep.subr.mxu0 0.0
        %634 = vmatpush1.msra.mxu0 0.0
        %635 = vmatprep.subr.mxu0 0.0
        %636 = vmatpush1.msra.mxu0 0.0
        %637 = vmatprep.subr.mxu0 0.0
        %638 = vmatpush1.msra.mxu0 0.0
        %639 = vmatprep.subr.mxu0 0.0
        %640 = vmatpush1.msra.mxu0 0.0
        %641 = vmatprep.subr.mxu0 0.0
        %642 = vmatpush1.msra.mxu0 0.0
        %643 = vmatprep.subr.mxu0 0.0
        %644 = vmatpush1.msra.mxu0 0.0
        %645 = vmatprep.subr.mxu0 0.0
        %646 = vmatpush1.msra.mxu0 0.0
        %647 = vmatprep.subr.mxu0 0.0
        %648 = vmatpush1.msra.mxu0 0.0
        %649 = vmatprep.subr.mxu0 0.0
        %650 = vmatpush1.msra.mxu0 0.0
        %651 = vmatprep.subr.mxu0 0.0
        %652 = vmatpush1.msra.mxu0 0.0
        %653 = vmatprep.subr.mxu0 0.0
        %654 = vmatpush1.msra.mxu0 0.0
        %655 = vmatprep.subr.mxu0 0.0
        %656 = vmatpush1.msra.mxu0 0.0
        %657 = vmatprep.subr.mxu0 0.0
        %658 = vmatpush1.msra.mxu0 0.0
        %659 = vmatprep.subr.mxu0 0.0
        %660 = vmatpush1.msra.mxu0 0.0
        %661 = vmatprep.subr.mxu0 0.0
        %662 = vmatpush1.msra.mxu0 0.0
        %663 = vmatprep.subr.mxu0 0.0
        %664 = vmatpush1.msra.mxu0 0.0
        %665 = vmatprep.subr.mxu0 0.0
        %666 = vmatpush1.msra.mxu0 0.0
        %667 = vmatprep.subr.mxu0 0.0
        %668 = vmatpush1.msra.mxu0 0.0
        %669 = vmatprep.subr.mxu0 0.0
        %670 = vmatpush1.msra.mxu0 0.0
        %671 = vmatprep.subr.mxu0 0.0
        %672 = vmatpush1.msra.mxu0 0.0
        %673 = vmatprep.subr.mxu0 0.0
        %674 = vmatpush1.msra.mxu0 0.0
        %675 = vmatprep.subr.mxu0 0.0
        %676 = vmatpush1.msra.mxu0 0.0
        %677 = vmatprep.subr.mxu0 0.0
        %678 = vmatpush1.msra.mxu0 0.0
        %679 = vmatprep.subr.mxu0 0.0
        %680 = vmatpush1.msra.mxu0 0.0
        %681 = vmatprep.mubr.f32.mxu0 0.0
        %682 = vmatmul.mubr.f32.gmra.mrb[0].mxu0 %v588
        %v683 = vpop.f32.mrb[0].mxu0
        %v684 = vadd.f32 %v585, %v683
        %v685 = vpop.f32.mrb[0].mxu0
        %686 = vmatprep.mubr.f32.mxu0 0.0
        %687 = vmatmul.mubr.f32.gmra.mrb[0].mxu0 %v591
        %v688 = vpop.f32.mrb[0].mxu0
        %v689 = vadd.f32 %v585, %v688
        %v690 = vpop.f32.mrb[0].mxu0
        %691 = vmatprep.mubr.f32.mxu0 0.0
        %692 = vmatmul.mubr.f32.gmra.mrb[0].mxu0 %v594
        %v693 = vpop.f32.mrb[0].mxu0
        %v694 = vadd.f32 %v585, %v693
        %v695 = vpop.f32.mrb[0].mxu0
        %696 = vmatprep.mubr.f32.mxu0 0.0
        %697 = vmatmul.mubr.f32.gmra.mrb[0].mxu0 %v597
        %v698 = vpop.f32.mrb[0].mxu0
        %v699 = vadd.f32 %v585, %v698
        %v700 = vpop.f32.mrb[0].mxu0
        %701 = vmatprep.mubr.f32.mxu0 0.0
        %702 = vmatmul.mubr.f32.gmra.mrb[0].mxu0 %v600
        %v703 = vpop.f32.mrb[0].mxu0
        %v704 = vadd.f32 %v585, %v703
        %v705 = vpop.f32.mrb[0].mxu0
        %706 = vmatprep.mubr.f32.mxu0 0.0
        %707 = vmatmul.mubr.f32.gmra.mrb[0].mxu0 %v603
        %v708 = vpop.f32.mrb[0].mxu0
        %v709 = vadd.f32 %v585, %v708
        %v710 = vpop.f32.mrb[0].mxu0
        %711 = vmatprep.mubr.f32.mxu0 0.0
        %712 = vmatmul.mubr.f32.gmra.mrb[0].mxu0 %v606
        %v713 = vpop.f32.mrb[0].mxu0
        %v714 = vadd.f32 %v585, %v713
        %v715 = vpop.f32.mrb[0].mxu0
        %716 = vmatprep.mubr.f32.mxu0 0.0
        %717 = vmatmul.mubr.f32.gmra.mrb[0].mxu0 %v609
        %v718 = vpop.f32.mrb[0].mxu0
        %v719 = vadd.f32 %v585, %v718
        %v720 = vpop.f32.mrb[0].mxu0
        %721 = vmatprep.mubr.f32.mxu0 0.0
        %722 = vmatmul.mubr.f32.gmra.mrb[0].mxu0 %v612
        %v723 = vpop.f32.mrb[0].mxu0
        %v724 = vadd.f32 %v585, %v723
        %v725 = vpop.f32.mrb[0].mxu0
        %726 = vmatprep.mubr.f32.mxu0 0.0
        %727 = vmatmul.mubr.f32.gmra.mrb[0].mxu0 %v615
        %v728 = vpop.f32.mrb[0].mxu0
        %v729 = vadd.f32 %v585, %v728
        %v730 = vpop.f32.mrb[0].mxu0
        %731 = vdwg.mxu0
        %vm732 = vcmask 130048
        %733 = vst.msk [vmem:[%s315] sm:$0xff] %vm732, %v684
        %734 = vst.msk [vmem:[%s315 + $0x8] sm:$0xff] %vm732, %v689
        %735 = vst.msk [vmem:[%s315 + $0x10] sm:$0xff] %vm732, %v694
        %736 = vst.msk [vmem:[%s315 + $0x18] sm:$0xff] %vm732, %v699
        %737 = vst.msk [vmem:[%s315 + $0x20] sm:$0xff] %vm732, %v704
        %738 = vst.msk [vmem:[%s315 + $0x28] sm:$0xff] %vm732, %v709
        %739 = vst.msk [vmem:[%s315 + $0x30] sm:$0xff] %vm732, %v714
        %740 = vst.msk [vmem:[%s315 + $0x38] sm:$0xff] %vm732, %v719
        %741 = vst.msk [vmem:[%s315 + $0x40] sm:$0xff] %vm732, %v724
        %742 = vst.msk [vmem:[%s315 + $0x48] sm:$0xff] %vm732, %v729
        %s743 = sand.u32 %s163, 1
        %s744 = sand.u32 %s163, 1
        %s745 = smul.addr %s744, 80
        %s746 = scalar_lea.vmem [#allocation2], %s745
        %s747 = sand.u32 %s189, 1
        %s748 = sand.u32 %s189, 1
        %s749 = smul.addr %s748, 80
        %s750 = scalar_lea.vmem [#allocation3], %s749
        // Predicated region
        $region45: #{tpu_custom_call.1} parent=43 // pred_check
          %p751 = pneg %p173
        $region46: #{tpu_custom_call.1} parent=43 // pred_check_branch
          %753 = sbr.rel (%p751) target = $region48
        $region47: #{tpu_custom_call.1} parent=43 // pred_region
          %s754 = smul.u32 10, %s19
          %s755 = ssub.s32 38, %s754
          %p756 = scmp.lt.s32.totalorder %s755, 10
          %s757 = scalar_select %p756, %s755, 10
          %s758 = smul.u32 128, %s757
          %p759 = scmp.ne.s32.totalorder 0, %s758
          %s760 = smul.addr %s754, 8
          %s761 = scalar_lea.vmem %s6, %s760
          // Predicated region
          $region49: #{tpu_custom_call.1} parent=47 // pred_check
            %p762 = pneg %p759
          $region50: #{tpu_custom_call.1} parent=47 // pred_check_branch
            %764 = sbr.rel (%p762) target = $region52
          $region51: #{tpu_custom_call.1} parent=47 // pred_region
            // Predicated region
            $region53: #{tpu_custom_call.1} parent=51 // pred_check
              _
            $region54: #{tpu_custom_call.1} parent=51 // pred_check_branch
              %766 = sbr.rel (0) target = $region56
            $region55: #{tpu_custom_call.1} parent=51 // pred_region
              // Predicated region
              $region75: #{tpu_custom_call.1} parent=55 // pred_check
                _
              $region76: #{tpu_custom_call.1} parent=55 // pred_check_branch
                %834 = sbr.rel (0) target = $region78
              $region77: #{tpu_custom_call.1} parent=55 // pred_region
                %s835 = sdiv.u32.pop %s757, 10
                %s836 = srem.u32.pop %s757, 10
                // While loop
                $region79: #{tpu_custom_call.1} parent=77 // loop_pre_header
                  _
                $region80: #{tpu_custom_call.1} parent=77 // loop_header
                  %s838 = sphi 0, %s840
                  %p839 = scmp.ge.s32.totalorder %s838, %s835
                  %s843 = sphi 0, %s868
                  %s844 = sphi %s746, %s871
                  %s845 = sphi %s761, %s872
                $region81: #{tpu_custom_call.1} parent=77 // loop_header_branch
                  %842 = sbr.rel (%p839) target = $region85
                $region82: #{tpu_custom_call.1} parent=77 // loop_body
                  %v846 = vld [vmem:[%s844] sm:$0xff]
                  %847 = vst [vmem:[%s845] sm:$0xff] %v846
                  %v848 = vld [vmem:[%s844 + $0x8] sm:$0xff]
                  %849 = vst [vmem:[%s845 + $0x8] sm:$0xff] %v848
                  %v850 = vld [vmem:[%s844 + $0x10] sm:$0xff]
                  %851 = vst [vmem:[%s845 + $0x10] sm:$0xff] %v850
                  %v852 = vld [vmem:[%s844 + $0x18] sm:$0xff]
                  %853 = vst [vmem:[%s845 + $0x18] sm:$0xff] %v852
                  %v854 = vld [vmem:[%s844 + $0x20] sm:$0xff]
                  %855 = vst [vmem:[%s845 + $0x20] sm:$0xff] %v854
                  %v856 = vld [vmem:[%s844 + $0x28] sm:$0xff]
                  %857 = vst [vmem:[%s845 + $0x28] sm:$0xff] %v856
                  %v858 = vld [vmem:[%s844 + $0x30] sm:$0xff]
                  %859 = vst [vmem:[%s845 + $0x30] sm:$0xff] %v858
                  %v860 = vld [vmem:[%s844 + $0x38] sm:$0xff]
                  %861 = vst [vmem:[%s845 + $0x38] sm:$0xff] %v860
                  %v862 = vld [vmem:[%s844 + $0x40] sm:$0xff]
                  %863 = vst [vmem:[%s845 + $0x40] sm:$0xff] %v862
                  %v864 = vld [vmem:[%s844 + $0x48] sm:$0xff]
                  %865 = vst [vmem:[%s845 + $0x48] sm:$0xff] %v864
                  %s866 = sadd.s32 1, %s843
                  %p867 = scmp.ge.s32.totalorder %s866, %s835
                  %s868 = scalar_select %p867, 0, %s866
                  %s869 = smul.u32 %s868, 80
                  %s870 = smul.u32 %s868, 80
                  %s871 = scalar_lea.vmem %s746, %s869 [#allocation2]
                  %s872 = scalar_lea.vmem %s761, %s870
                $region83: #{tpu_custom_call.1} parent=77 // loop_footer
                  %s840 = sadd.s32 %s838, 1
                $region84: #{tpu_custom_call.1} parent=77 // loop_footer_branch
                  %837 = sbr.rel target = $region80
                $region85: #{tpu_custom_call.1} parent=77 // loop_exit
                  _
                %s873 = sdiv.u32.pop %s757, 10
                %s874 = srem.u32.pop %s757, 10
                %s875 = smul.u32 %s873, 10
                %s876 = smul.u32 8, %s875
                %s877 = scalar_lea.vmem %s746, %s876 [#allocation2]
                %s878 = smul.u32 8, %s875
                %s879 = scalar_lea.vmem %s761, %s878
                // While loop
                $region86: #{tpu_custom_call.1} parent=77 // loop_pre_header
                  _
                $region87: #{tpu_custom_call.1} parent=77 // loop_header
                  %s881 = sphi 0, %s883
                  %p882 = scmp.ge.s32.totalorder %s881, %s874
                  %s886 = sphi 0, %s893
                  %s887 = sphi %s877, %s896
                  %s888 = sphi %s879, %s897
                $region88: #{tpu_custom_call.1} parent=77 // loop_header_branch
                  %885 = sbr.rel (%p882) target = $region92
                $region89: #{tpu_custom_call.1} parent=77 // loop_body
                  %v889 = vld [vmem:[%s887] sm:$0xff]
                  %890 = vst [vmem:[%s888] sm:$0xff] %v889
                  %s891 = sadd.s32 1, %s886
                  %p892 = scmp.ge.s32.totalorder %s891, %s874
                  %s893 = scalar_select %p892, 0, %s891
                  %s894 = smul.u32 %s893, 8
                  %s895 = smul.u32 %s893, 8
                  %s896 = scalar_lea.vmem %s877, %s894 [#allocation2]
                  %s897 = scalar_lea.vmem %s879, %s895
                $region90: #{tpu_custom_call.1} parent=77 // loop_footer
                  %s883 = sadd.s32 %s881, 1
                $region91: #{tpu_custom_call.1} parent=77 // loop_footer_branch
                  %880 = sbr.rel target = $region87
                $region92: #{tpu_custom_call.1} parent=77 // loop_exit
                  _
              $region78: #{tpu_custom_call.1} parent=55 // pred_fallthru
                _
              // Predicated region
              $region93: #{tpu_custom_call.1} parent=55 // pred_check
                _
              $region94: #{tpu_custom_call.1} parent=55 // pred_check_branch
                %899 = sbr.rel target = $region96
              $region95: #{tpu_custom_call.1} parent=55 // pred_region
                _
              $region96: #{tpu_custom_call.1} parent=55 // pred_fallthru
                _
            $region56: #{tpu_custom_call.1} parent=51 // pred_fallthru
              _
            // Predicated region
            $region57: #{tpu_custom_call.1} parent=51 // pred_check
              _
            $region58: #{tpu_custom_call.1} parent=51 // pred_check_branch
              %768 = sbr.rel target = $region60
            $region59: #{tpu_custom_call.1} parent=51 // pred_region
              %s770 = sdiv.u32.pop %s757, 10
              %s771 = srem.u32.pop %s757, 10
              // While loop
              $region61: #{tpu_custom_call.1} parent=59 // loop_pre_header
                _
              $region62: #{tpu_custom_call.1} parent=59 // loop_header
                %s773 = sphi 0, %s775
                %p774 = scmp.ge.s32.totalorder %s773, %s770
                %s778 = sphi 0, %s803
                %s779 = sphi %s746, %s806
                %s780 = sphi %s761, %s807
              $region63: #{tpu_custom_call.1} parent=59 // loop_header_branch
                %777 = sbr.rel (%p774) target = $region67
              $region64: #{tpu_custom_call.1} parent=59 // loop_body
                %v781 = vld [vmem:[%s779] sm:$0xff]
                %782 = vst [vmem:[%s780] sm:$0xff] %v781
                %v783 = vld [vmem:[%s779 + $0x8] sm:$0xff]
                %784 = vst [vmem:[%s780 + $0x8] sm:$0xff] %v783
                %v785 = vld [vmem:[%s779 + $0x10] sm:$0xff]
                %786 = vst [vmem:[%s780 + $0x10] sm:$0xff] %v785
                %v787 = vld [vmem:[%s779 + $0x18] sm:$0xff]
                %788 = vst [vmem:[%s780 + $0x18] sm:$0xff] %v787
                %v789 = vld [vmem:[%s779 + $0x20] sm:$0xff]
                %790 = vst [vmem:[%s780 + $0x20] sm:$0xff] %v789
                %v791 = vld [vmem:[%s779 + $0x28] sm:$0xff]
                %792 = vst [vmem:[%s780 + $0x28] sm:$0xff] %v791
                %v793 = vld [vmem:[%s779 + $0x30] sm:$0xff]
                %794 = vst [vmem:[%s780 + $0x30] sm:$0xff] %v793
                %v795 = vld [vmem:[%s779 + $0x38] sm:$0xff]
                %796 = vst [vmem:[%s780 + $0x38] sm:$0xff] %v795
                %v797 = vld [vmem:[%s779 + $0x40] sm:$0xff]
                %798 = vst [vmem:[%s780 + $0x40] sm:$0xff] %v797
                %v799 = vld [vmem:[%s779 + $0x48] sm:$0xff]
                %800 = vst [vmem:[%s780 + $0x48] sm:$0xff] %v799
                %s801 = sadd.s32 1, %s778
                %p802 = scmp.ge.s32.totalorder %s801, %s770
                %s803 = scalar_select %p802, 0, %s801
                %s804 = smul.u32 %s803, 80
                %s805 = smul.u32 %s803, 80
                %s806 = scalar_lea.vmem %s746, %s804 [#allocation2]
                %s807 = scalar_lea.vmem %s761, %s805
              $region65: #{tpu_custom_call.1} parent=59 // loop_footer
                %s775 = sadd.s32 %s773, 1
              $region66: #{tpu_custom_call.1} parent=59 // loop_footer_branch
                %772 = sbr.rel target = $region62
              $region67: #{tpu_custom_call.1} parent=59 // loop_exit
                _
              %s808 = sdiv.u32.pop %s757, 10
              %s809 = srem.u32.pop %s757, 10
              %s810 = smul.u32 %s808, 10
              %s811 = smul.u32 8, %s810
              %s812 = scalar_lea.vmem %s746, %s811 [#allocation2]
              %s813 = smul.u32 8, %s810
              %s814 = scalar_lea.vmem %s761, %s813
              // While loop
              $region68: #{tpu_custom_call.1} parent=59 // loop_pre_header
                _
              $region69: #{tpu_custom_call.1} parent=59 // loop_header
                %s816 = sphi 0, %s818
                %p817 = scmp.ge.s32.totalorder %s816, %s809
                %s821 = sphi 0, %s828
                %s822 = sphi %s812, %s831
                %s823 = sphi %s814, %s832
              $region70: #{tpu_custom_call.1} parent=59 // loop_header_branch
                %820 = sbr.rel (%p817) target = $region74
              $region71: #{tpu_custom_call.1} parent=59 // loop_body
                %v824 = vld [vmem:[%s822] sm:$0xff]
                %825 = vst [vmem:[%s823] sm:$0xff] %v824
                %s826 = sadd.s32 1, %s821
                %p827 = scmp.ge.s32.totalorder %s826, %s809
                %s828 = scalar_select %p827, 0, %s826
                %s829 = smul.u32 %s828, 8
                %s830 = smul.u32 %s828, 8
                %s831 = scalar_lea.vmem %s812, %s829 [#allocation2]
                %s832 = scalar_lea.vmem %s814, %s830
              $region72: #{tpu_custom_call.1} parent=59 // loop_footer
                %s818 = sadd.s32 %s816, 1
              $region73: #{tpu_custom_call.1} parent=59 // loop_footer_branch
                %815 = sbr.rel target = $region69
              $region74: #{tpu_custom_call.1} parent=59 // loop_exit
                _
            $region60: #{tpu_custom_call.1} parent=51 // pred_fallthru
              _
          $region52: #{tpu_custom_call.1} parent=47 // pred_fallthru
            _
          %900 = vnop
        $region48: #{tpu_custom_call.1} parent=43 // pred_fallthru
          _
        // Predicated region
        $region97: #{tpu_custom_call.1} parent=43 // pred_check
          %p901 = pneg %p199
        $region98: #{tpu_custom_call.1} parent=43 // pred_check_branch
          %903 = sbr.rel (%p901) target = $region100
        $region99: #{tpu_custom_call.1} parent=43 // pred_region
          %s904 = smul.u32 10, %s19
          %s905 = ssub.s32 38, %s904
          %p906 = scmp.lt.s32.totalorder %s905, 10
          %s907 = scalar_select %p906, %s905, 10
          %s908 = smul.u32 128, %s907
          %p909 = scmp.ne.s32.totalorder 0, %s908
          %s910 = smul.addr %s904, 8
          %s911 = scalar_lea.vmem %s7, %s910
          // Predicated region
          $region101: #{tpu_custom_call.1} parent=99 // pred_check
            %p912 = pneg %p909
          $region102: #{tpu_custom_call.1} parent=99 // pred_check_branch
            %914 = sbr.rel (%p912) target = $region104
          $region103: #{tpu_custom_call.1} parent=99 // pred_region
            // Predicated region
            $region105: #{tpu_custom_call.1} parent=103 // pred_check
              _
            $region106: #{tpu_custom_call.1} parent=103 // pred_check_branch
              %916 = sbr.rel (0) target = $region108
            $region107: #{tpu_custom_call.1} parent=103 // pred_region
              // Predicated region
              $region127: #{tpu_custom_call.1} parent=107 // pred_check
                _
              $region128: #{tpu_custom_call.1} parent=107 // pred_check_branch
                %984 = sbr.rel (0) target = $region130
              $region129: #{tpu_custom_call.1} parent=107 // pred_region
                %s985 = sdiv.u32.pop %s907, 10
                %s986 = srem.u32.pop %s907, 10
                // While loop
                $region131: #{tpu_custom_call.1} parent=129 // loop_pre_header
                  _
                $region132: #{tpu_custom_call.1} parent=129 // loop_header
                  %s988 = sphi 0, %s990
                  %p989 = scmp.ge.s32.totalorder %s988, %s985
                  %s993 = sphi 0, %s1018
                  %s994 = sphi %s750, %s1021
                  %s995 = sphi %s911, %s1022
                $region133: #{tpu_custom_call.1} parent=129 // loop_header_branch
                  %992 = sbr.rel (%p989) target = $region137
                $region134: #{tpu_custom_call.1} parent=129 // loop_body
                  %v996 = vld [vmem:[%s994] sm:$0xff]
                  %997 = vst [vmem:[%s995] sm:$0xff] %v996
                  %v998 = vld [vmem:[%s994 + $0x8] sm:$0xff]
                  %999 = vst [vmem:[%s995 + $0x8] sm:$0xff] %v998
                  %v1000 = vld [vmem:[%s994 + $0x10] sm:$0xff]
                  %1001 = vst [vmem:[%s995 + $0x10] sm:$0xff] %v1000
                  %v1002 = vld [vmem:[%s994 + $0x18] sm:$0xff]
                  %1003 = vst [vmem:[%s995 + $0x18] sm:$0xff] %v1002
                  %v1004 = vld [vmem:[%s994 + $0x20] sm:$0xff]
                  %1005 = vst [vmem:[%s995 + $0x20] sm:$0xff] %v1004
                  %v1006 = vld [vmem:[%s994 + $0x28] sm:$0xff]
                  %1007 = vst [vmem:[%s995 + $0x28] sm:$0xff] %v1006
                  %v1008 = vld [vmem:[%s994 + $0x30] sm:$0xff]
                  %1009 = vst [vmem:[%s995 + $0x30] sm:$0xff] %v1008
                  %v1010 = vld [vmem:[%s994 + $0x38] sm:$0xff]
                  %1011 = vst [vmem:[%s995 + $0x38] sm:$0xff] %v1010
                  %v1012 = vld [vmem:[%s994 + $0x40] sm:$0xff]
                  %1013 = vst [vmem:[%s995 + $0x40] sm:$0xff] %v1012
                  %v1014 = vld [vmem:[%s994 + $0x48] sm:$0xff]
                  %1015 = vst [vmem:[%s995 + $0x48] sm:$0xff] %v1014
                  %s1016 = sadd.s32 1, %s993
                  %p1017 = scmp.ge.s32.totalorder %s1016, %s985
                  %s1018 = scalar_select %p1017, 0, %s1016
                  %s1019 = smul.u32 %s1018, 80
                  %s1020 = smul.u32 %s1018, 80
                  %s1021 = scalar_lea.vmem %s750, %s1019 [#allocation3]
                  %s1022 = scalar_lea.vmem %s911, %s1020
                $region135: #{tpu_custom_call.1} parent=129 // loop_footer
                  %s990 = sadd.s32 %s988, 1
                $region136: #{tpu_custom_call.1} parent=129 // loop_footer_branch
                  %987 = sbr.rel target = $region132
                $region137: #{tpu_custom_call.1} parent=129 // loop_exit
                  _
                %s1023 = sdiv.u32.pop %s907, 10
                %s1024 = srem.u32.pop %s907, 10
                %s1025 = smul.u32 %s1023, 10
                %s1026 = smul.u32 8, %s1025
                %s1027 = scalar_lea.vmem %s750, %s1026 [#allocation3]
                %s1028 = smul.u32 8, %s1025
                %s1029 = scalar_lea.vmem %s911, %s1028
                // While loop
                $region138: #{tpu_custom_call.1} parent=129 // loop_pre_header
                  _
                $region139: #{tpu_custom_call.1} parent=129 // loop_header
                  %s1031 = sphi 0, %s1033
                  %p1032 = scmp.ge.s32.totalorder %s1031, %s1024
                  %s1036 = sphi 0, %s1043
                  %s1037 = sphi %s1027, %s1046
                  %s1038 = sphi %s1029, %s1047
                $region140: #{tpu_custom_call.1} parent=129 // loop_header_branch
                  %1035 = sbr.rel (%p1032) target = $region144
                $region141: #{tpu_custom_call.1} parent=129 // loop_body
                  %v1039 = vld [vmem:[%s1037] sm:$0xff]
                  %1040 = vst [vmem:[%s1038] sm:$0xff] %v1039
                  %s1041 = sadd.s32 1, %s1036
                  %p1042 = scmp.ge.s32.totalorder %s1041, %s1024
                  %s1043 = scalar_select %p1042, 0, %s1041
                  %s1044 = smul.u32 %s1043, 8
                  %s1045 = smul.u32 %s1043, 8
                  %s1046 = scalar_lea.vmem %s1027, %s1044 [#allocation3]
                  %s1047 = scalar_lea.vmem %s1029, %s1045
                $region142: #{tpu_custom_call.1} parent=129 // loop_footer
                  %s1033 = sadd.s32 %s1031, 1
                $region143: #{tpu_custom_call.1} parent=129 // loop_footer_branch
                  %1030 = sbr.rel target = $region139
                $region144: #{tpu_custom_call.1} parent=129 // loop_exit
                  _
              $region130: #{tpu_custom_call.1} parent=107 // pred_fallthru
                _
              // Predicated region
              $region145: #{tpu_custom_call.1} parent=107 // pred_check
                _
              $region146: #{tpu_custom_call.1} parent=107 // pred_check_branch
                %1049 = sbr.rel target = $region148
              $region147: #{tpu_custom_call.1} parent=107 // pred_region
                _
              $region148: #{tpu_custom_call.1} parent=107 // pred_fallthru
                _
            $region108: #{tpu_custom_call.1} parent=103 // pred_fallthru
              _
            // Predicated region
            $region109: #{tpu_custom_call.1} parent=103 // pred_check
              _
            $region110: #{tpu_custom_call.1} parent=103 // pred_check_branch
              %918 = sbr.rel target = $region112
            $region111: #{tpu_custom_call.1} parent=103 // pred_region
              %s920 = sdiv.u32.pop %s907, 10
              %s921 = srem.u32.pop %s907, 10
              // While loop
              $region113: #{tpu_custom_call.1} parent=111 // loop_pre_header
                _
              $region114: #{tpu_custom_call.1} parent=111 // loop_header
                %s923 = sphi 0, %s925
                %p924 = scmp.ge.s32.totalorder %s923, %s920
                %s928 = sphi 0, %s953
                %s929 = sphi %s750, %s956
                %s930 = sphi %s911, %s957
              $region115: #{tpu_custom_call.1} parent=111 // loop_header_branch
                %927 = sbr.rel (%p924) target = $region119
              $region116: #{tpu_custom_call.1} parent=111 // loop_body
                %v931 = vld [vmem:[%s929] sm:$0xff]
                %932 = vst [vmem:[%s930] sm:$0xff] %v931
                %v933 = vld [vmem:[%s929 + $0x8] sm:$0xff]
                %934 = vst [vmem:[%s930 + $0x8] sm:$0xff] %v933
                %v935 = vld [vmem:[%s929 + $0x10] sm:$0xff]
                %936 = vst [vmem:[%s930 + $0x10] sm:$0xff] %v935
                %v937 = vld [vmem:[%s929 + $0x18] sm:$0xff]
                %938 = vst [vmem:[%s930 + $0x18] sm:$0xff] %v937
                %v939 = vld [vmem:[%s929 + $0x20] sm:$0xff]
                %940 = vst [vmem:[%s930 + $0x20] sm:$0xff] %v939
                %v941 = vld [vmem:[%s929 + $0x28] sm:$0xff]
                %942 = vst [vmem:[%s930 + $0x28] sm:$0xff] %v941
                %v943 = vld [vmem:[%s929 + $0x30] sm:$0xff]
                %944 = vst [vmem:[%s930 + $0x30] sm:$0xff] %v943
                %v945 = vld [vmem:[%s929 + $0x38] sm:$0xff]
                %946 = vst [vmem:[%s930 + $0x38] sm:$0xff] %v945
                %v947 = vld [vmem:[%s929 + $0x40] sm:$0xff]
                %948 = vst [vmem:[%s930 + $0x40] sm:$0xff] %v947
                %v949 = vld [vmem:[%s929 + $0x48] sm:$0xff]
                %950 = vst [vmem:[%s930 + $0x48] sm:$0xff] %v949
                %s951 = sadd.s32 1, %s928
                %p952 = scmp.ge.s32.totalorder %s951, %s920
                %s953 = scalar_select %p952, 0, %s951
                %s954 = smul.u32 %s953, 80
                %s955 = smul.u32 %s953, 80
                %s956 = scalar_lea.vmem %s750, %s954 [#allocation3]
                %s957 = scalar_lea.vmem %s911, %s955
              $region117: #{tpu_custom_call.1} parent=111 // loop_footer
                %s925 = sadd.s32 %s923, 1
              $region118: #{tpu_custom_call.1} parent=111 // loop_footer_branch
                %922 = sbr.rel target = $region114
              $region119: #{tpu_custom_call.1} parent=111 // loop_exit
                _
              %s958 = sdiv.u32.pop %s907, 10
              %s959 = srem.u32.pop %s907, 10
              %s960 = smul.u32 %s958, 10
              %s961 = smul.u32 8, %s960
              %s962 = scalar_lea.vmem %s750, %s961 [#allocation3]
              %s963 = smul.u32 8, %s960
              %s964 = scalar_lea.vmem %s911, %s963
              // While loop
              $region120: #{tpu_custom_call.1} parent=111 // loop_pre_header
                _
              $region121: #{tpu_custom_call.1} parent=111 // loop_header
                %s966 = sphi 0, %s968
                %p967 = scmp.ge.s32.totalorder %s966, %s959
                %s971 = sphi 0, %s978
                %s972 = sphi %s962, %s981
                %s973 = sphi %s964, %s982
              $region122: #{tpu_custom_call.1} parent=111 // loop_header_branch
                %970 = sbr.rel (%p967) target = $region126
              $region123: #{tpu_custom_call.1} parent=111 // loop_body
                %v974 = vld [vmem:[%s972] sm:$0xff]
                %975 = vst [vmem:[%s973] sm:$0xff] %v974
                %s976 = sadd.s32 1, %s971
                %p977 = scmp.ge.s32.totalorder %s976, %s959
                %s978 = scalar_select %p977, 0, %s976
                %s979 = smul.u32 %s978, 8
                %s980 = smul.u32 %s978, 8
                %s981 = scalar_lea.vmem %s962, %s979 [#allocation3]
                %s982 = scalar_lea.vmem %s964, %s980
              $region124: #{tpu_custom_call.1} parent=111 // loop_footer
                %s968 = sadd.s32 %s966, 1
              $region125: #{tpu_custom_call.1} parent=111 // loop_footer_branch
                %965 = sbr.rel target = $region121
              $region126: #{tpu_custom_call.1} parent=111 // loop_exit
                _
            $region112: #{tpu_custom_call.1} parent=103 // pred_fallthru
              _
          $region104: #{tpu_custom_call.1} parent=99 // pred_fallthru
            _
          %1050 = vnop
        $region100: #{tpu_custom_call.1} parent=43 // pred_fallthru
          _
      $region44: #{tpu_custom_call.1} parent=5 // pred_fallthru
        _
      %p1051 = scmp.le.s32.totalorder 2, %s14
      // Predicated region
      $region149: #{tpu_custom_call.1} parent=5 // pred_check
        %p1052 = pneg %p1051
      $region150: #{tpu_custom_call.1} parent=5 // pred_check_branch
        %1054 = sbr.rel (%p1052) target = $region152
      $region151: #{tpu_custom_call.1} parent=5 // pred_region
        %s1055 = ssub.s32 %s14, 2
        // Predicated region
        $region153: #{tpu_custom_call.1} parent=151 // pred_check
          %p1056 = pneg %p179
        $region154: #{tpu_custom_call.1} parent=151 // pred_check_branch
          %1058 = sbr.rel (%p1056) target = $region156
        $region155: #{tpu_custom_call.1} parent=151 // pred_region
          %s1059 = sand.u32 %s164, 1
          %s1060 = sand.u32 %s164, 1
          %s1061 = smul.addr %s1060, 80
          %s1062 = scalar_lea.vmem [#allocation2], %s1061
        $region156: #{tpu_custom_call.1} parent=151 // pred_fallthru
          _
        // Predicated region
        $region157: #{tpu_custom_call.1} parent=151 // pred_check
          %p1063 = pneg %p205
        $region158: #{tpu_custom_call.1} parent=151 // pred_check_branch
          %1065 = sbr.rel (%p1063) target = $region160
        $region159: #{tpu_custom_call.1} parent=151 // pred_region
          %s1066 = sand.u32 %s190, 1
          %s1067 = sand.u32 %s190, 1
          %s1068 = smul.addr %s1067, 80
          %s1069 = scalar_lea.vmem [#allocation3], %s1068
        $region160: #{tpu_custom_call.1} parent=151 // pred_fallthru
          _
      $region152: #{tpu_custom_call.1} parent=5 // pred_fallthru
        _
    $region6: #{tpu_custom_call.1} parent=1 // loop_footer
      %s18 = sadd.s32 1, %s14
    $region7: #{tpu_custom_call.1} parent=1 // loop_footer_branch
      %13 = sbr.rel target = $region3
    $region8: #{tpu_custom_call.1} parent=1 // loop_exit
      _

</llo_original>
